<compile_context>
chip_gen: v7x
topology: tpu7x:2x2x1
jax: 0.10.0
libtpu: 0.0.40
codegen_flags: <defaults>
</compile_context>

<pallas_src>
import functools

import jax
import jax.numpy as jnp
from jax.experimental import pallas as pl
from jax.experimental.pallas import tpu as pltpu

# --- synthetic config (small, consistent with the module) ---
B = 2            # batch
N = 8            # seq length
H = 32           # config.hidden_size
NUM_HEADS = 4    # config.num_attention_heads
HEAD_DIM = H // NUM_HEADS
INTER = 64       # config.intermediate_size
EPS = 1e-12      # config.layer_norm_eps
# config.hidden_act = "gelu_new" (tanh-approx gelu); config.attention_band = None
# dropout probs = 0 (eval) -> identity

_HI = jax.lax.Precision.HIGHEST   # only used by the pure-JAX reference

# Row layout of the packed lane-32 parameter slab (all offsets multiples of 16 -> aligned
# with bf16 sublane packing, so the static ref slices below are free).
_R_HMASK = 0                       # head_mask            (H, H)
_R_WD = _R_HMASK + H               # attention dense W^T  (H, H)
_R_WO = _R_WD + H                  # ffn_output W^T       (INTER, H)
_R_VECS = _R_WO + INTER            # bd, g1, be1, bo, g2, be2  (6, H)
_W32_ROWS = _R_VECS + 6            # = 134


def _elu_plus_one(t):
    # F.elu(x, alpha=1) + 1
    return jnp.where(t > 0, t + 1.0, jnp.exp(t))


def _layernorm(x, gamma, beta):
    mu = jnp.mean(x, axis=-1, keepdims=True)
    var = jnp.mean((x - mu) ** 2, axis=-1, keepdims=True)
    return (x - mu) * jax.lax.rsqrt(var + EPS) * gamma + beta


def _dot(a, b):
    # MXU matmul, f32 accumulation (operands already bf16 or rounded per-pass to bf16).
    return jnp.dot(a, b, preferred_element_type=jnp.float32)


def oskar_layer_kernel(x_ref, mask_ref, wqkv_ref, wffn_ref, w32_ref, out_ref):
    rows = x_ref.shape[0]          # BB * N (static)
    bb = rows // N                 # batch elements handled by this program

    x_bf = x_ref[...]                                   # (rows, H) bf16 MXU operand
    x = x_bf.astype(jnp.float32)                        # f32 copy for residual / LayerNorm
    m = mask_ref[...]                                   # (rows, 1) f32, lane-broadcast below

    # --- unpack parameter slabs with static (free) sublane slices ---
    wqkv = wqkv_ref[0:H, :]                             # (H, 3H)  bf16
    bqkv = wqkv_ref[H:H + 1, :].astype(jnp.float32)     # (1, 3H)
    wf = wffn_ref[0:H, :]                               # (H, INTER) bf16
    bf_b = wffn_ref[H:H + 1, :].astype(jnp.float32)     # (1, INTER)
    head_mask = w32_ref[_R_HMASK:_R_HMASK + H, :].astype(jnp.float32)   # (H, H) 0/1
    wd = w32_ref[_R_WD:_R_WD + H, :]                    # (H, H)     bf16
    wo = w32_ref[_R_WO:_R_WO + INTER, :]                # (INTER, H) bf16
    vecs = w32_ref[_R_VECS:_R_VECS + 6, :].astype(jnp.float32)          # (6, H) f32
    bd = vecs[0:1, :]
    g1 = vecs[1:2, :]
    be1 = vecs[2:3, :]
    bo = vecs[3:4, :]
    g2 = vecs[4:5, :]
    be2 = vecs[5:6, :]

    # --- fused QKV projection: one (rows, H) @ (H, 3H) bf16 MXU op, f32 accumulation ---
    qkv = _dot(x_bf, wqkv) + bqkv                       # (rows, 3H) f32
    q = _elu_plus_one(qkv[:, 0 * H:1 * H])              # elu(q)+1           (f32 VPU/EUP)
    k = _elu_plus_one(qkv[:, 1 * H:2 * H]) * m          # (elu(k)+1) * mask, (rows,1) broadcast
    v = qkv[:, 2 * H:3 * H]

    # Attention statistics are per batch element: tiny (<=2-iteration) static loop,
    # each iteration is 3 full-width MXU ops (block-diagonal head mask, no lane slicing).
    num_parts, den_parts = [], []
    for b in range(bb):
        qb = q[b * N:(b + 1) * N]                       # (N, H)
        kb = k[b * N:(b + 1) * N]
        vb = v[b * N:(b + 1) * N]
        ks = jnp.sum(kb, axis=0, keepdims=True)         # (1, H) = key.sum(dim=seq)
        ctx = jax.lax.dot_general(kb, vb, (((0,), (0,)), ((), ())),
                                  preferred_element_type=jnp.float32)   # (H, H) 'nd,ne->de'
        num_parts.append(_dot(qb, ctx * head_mask))     # 'de,nd->ne' restricted per head
        den_parts.append(_dot(qb * ks, head_mask))      # per-head denom, broadcast to lanes
    num = num_parts[0] if bb == 1 else jnp.concatenate(num_parts, axis=0)
    den = den_parts[0] if bb == 1 else jnp.concatenate(den_parts, axis=0)
    # NOTE: matches PyTorch (no clamp); a fully-masked sequence produces inf/nan here too.
    context = num * pl.reciprocal(den, approx=True)     # (rows, H)

    # dense output projection ('bfnd,ndh->bfh' == merged heads @ dense.weight.T) + res + LN
    # TODO(synk): dropout (attention_probs_dropout_prob / hidden dropout) treated as identity (eval).
    proj = _dot(context.astype(jnp.bfloat16), wd) + bd
    attn_out = _layernorm(x + proj, g1, be1)

    # FFN: Linear(H, I) -> gelu_new -> Linear(I, H), residual + full-layer LayerNorm
    f1 = jax.nn.gelu(_dot(attn_out.astype(jnp.bfloat16), wf) + bf_b, approximate=True)
    f2 = _dot(f1.astype(jnp.bfloat16), wo) + bo
    # TODO(synk): at realistic row counts present a lane-dense (., 128) output slab to avoid
    # masked vst.msk stores; at H=32 / rows=16 this is negligible (2 stores).
    out_ref[...] = _layernorm(f2 + attn_out, g2, be2)


def prepare_params(params):
    """One-time packing of the 16 PyTorch-layout parameters into 3 DMA-friendly slabs.

    Call once (e.g. at load time); the per-call wrapper does no parameter reshuffling.
    """
    (wq, bq, wk, bk, wv, bv, wd, bd, g1, be1, wf, bf, wo, bo, g2, be2) = params

    # lane-96 slab: fused QKV weight + bias                              -> (H+1, 3H)
    wqkv = jnp.concatenate([jnp.concatenate([wq, wk, wv], axis=1),
                            jnp.concatenate([bq, bk, bv], axis=1)], axis=0)
    # lane-64 slab: FFN weight + bias                                    -> (H+1, INTER)
    wffn = jnp.concatenate([wf, bf], axis=0)
    # lane-32 slab: block-diagonal head mask, dense W, ffn_output W, vectors -> (134, H)
    d_idx = jax.lax.broadcasted_iota(jnp.int32, (H, H), 0) // HEAD_DIM
    e_idx = jax.lax.broadcasted_iota(jnp.int32, (H, H), 1) // HEAD_DIM
    head_mask = (d_idx == e_idx).astype(jnp.float32)
    w32 = jnp.concatenate([head_mask, wd, wo, bd, g1, be1, bo, g2, be2], axis=0)
    assert w32.shape == (_W32_ROWS, H)

    return (wqkv.astype(jnp.bfloat16),
            wffn.astype(jnp.bfloat16),
            w32.astype(jnp.bfloat16))


@functools.partial(jax.jit, static_argnames=("batch_block",))
def oskar_layer(x, mask, packed_params, batch_block=None):
    """Forward pass. `packed_params` comes from prepare_params (one-time)."""
    wqkv, wffn, w32 = packed_params
    batch, seq, hid = x.shape

    # Whole batch in ONE grid step: per-step overhead (~0.35 us) dwarfs the compute here.
    # `batch_block` is only a lever for much larger batches (keep ~256-1024 rows per step).
    bb = batch if batch_block is None else batch_block
    grid = (batch // bb,)
    rows = bb * seq

    # bf16 activations halve DMA bytes; mask stays (rows, 1) and broadcasts in-kernel.
    x2 = x.reshape(batch * seq, hid).astype(jnp.bfloat16)
    mask2 = mask.reshape(batch * seq, 1).astype(jnp.float32)

    act_in = pl.BlockSpec((rows, hid), lambda b: (b, 0))
    mask_in = pl.BlockSpec((rows, 1), lambda b: (b, 0))
    out_spec = pl.BlockSpec((rows, hid), lambda b: (b, 0))

    def full(shape):
        return pl.BlockSpec(shape, lambda b: (0, 0))

    out2 = pl.pallas_call(
        oskar_layer_kernel,
        out_shape=jax.ShapeDtypeStruct((batch * seq, hid), jnp.float32),
        grid_spec=pltpu.PrefetchScalarGridSpec(
            num_scalar_prefetch=0,
            grid=grid,
            in_specs=[
                act_in,                       # x (flattened rows, bf16)
                mask_in,                      # attention mask (rows, 1)
                full((H + 1, 3 * H)),         # packed Wqkv + bqkv
                full((H + 1, INTER)),         # packed Wffn + bffn
                full((_W32_ROWS, H)),         # packed head_mask / Wd / Wo / vectors
            ],
            out_specs=out_spec,
        ),
        compiler_params=pltpu.CompilerParams(dimension_semantics=("arbitrary",)),
    )(x2, mask2, wqkv, wffn, w32)
    return out2.reshape(batch, seq, hid)


# --- pure-JAX reference mirroring the PyTorch forward, for a correctness check ---
def reference(x, mask, params):
    (wq, bq, wk, bk, wv, bv, wd, bd, g1, be1, wf, bf, wo, bo, g2, be2) = params

    def lin(t, w, b):
        return jnp.einsum('bnh,hk->bnk', t, w, precision=_HI) + b[0]

    def split(t):  # transpose_for_scores
        return t.reshape(B, N, NUM_HEADS, HEAD_DIM).transpose(0, 2, 1, 3)

    def ln(t, g, be):
        mu = t.mean(-1, keepdims=True)
        var = ((t - mu) ** 2).mean(-1, keepdims=True)
        return (t - mu) * jax.lax.rsqrt(var + EPS) * g[0] + be[0]

    qh = _elu_plus_one(split(lin(x, wq, bq)))
    kh = _elu_plus_one(split(lin(x, wk, bk)))
    vh = split(lin(x, wv, bv))
    kh = kh * mask[:, None, :, :]                                         # attention_mask * key
    d_inv = 1.0 / jnp.einsum('bhnd,bhd->bhn', qh, kh.sum(axis=2), precision=_HI)
    ctx = jnp.einsum('bhnd,bhne->bhde', kh, vh, precision=_HI)
    cl = jnp.einsum('bhde,bhnd,bhn->bhne', ctx, qh, d_inv, precision=_HI)
    cl = cl.transpose(0, 2, 1, 3).reshape(B, N, H)                        # permute + merge heads
    attn_out = ln(x + lin(cl, wd, bd), g1, be1)
    f1 = jax.nn.gelu(lin(attn_out, wf, bf), approximate=True)
    f2 = lin(f1, wo, bo)
    return ln(f2 + attn_out, g2, be2)


if __name__ == "__main__":
    key = jax.random.PRNGKey(0)
    ks = jax.random.split(key, 24)

    def wgen(k, shape, scale=0.05):
        return (scale * jax.random.normal(k, shape)).astype(jnp.float32)

    params = (
        wgen(ks[0], (H, H)), wgen(ks[1], (1, H)),                 # Wq^T, bq
        wgen(ks[2], (H, H)), wgen(ks[3], (1, H)),                 # Wk^T, bk
        wgen(ks[4], (H, H)), wgen(ks[5], (1, H)),                 # Wv^T, bv
        wgen(ks[6], (H, H)), wgen(ks[7], (1, H)),                 # dense W^T, b
        (1.0 + 0.1 * jax.random.normal(ks[8], (1, H))).astype(jnp.float32),
        wgen(ks[9], (1, H), 0.1),                                 # attn LayerNorm gamma, beta
        wgen(ks[10], (H, INTER)), wgen(ks[11], (1, INTER)),       # ffn W^T, b
        wgen(ks[12], (INTER, H)), wgen(ks[13], (1, H)),           # ffn_output W^T, b
        (1.0 + 0.1 * jax.random.normal(ks[14], (1, H))).astype(jnp.float32),
        wgen(ks[15], (1, H), 0.1),                                # full LayerNorm gamma, beta
    )

    x = jax.random.normal(ks[16], (B, N, H), dtype=jnp.float32)
    mask = jnp.ones((B, N, 1), dtype=jnp.float32).at[1, N - 1, 0].set(0.0)

    packed = prepare_params(params)                               # one-time packing
    out = jax.block_until_ready(oskar_layer(x, mask, packed))
    ref = jax.block_until_ready(reference(x, mask, params))

    err = float(jnp.max(jnp.abs(out - ref)))
    assert out.shape == (B, N, H)
    # bf16 MXU operands / bf16-packed params vs f32-HIGHEST reference -> relaxed tolerance.
    assert jnp.allclose(out, ref, rtol=3e-2, atol=3e-2), err
    print("KERNEL_OK")
</pallas_src>

<mosaic_0001>
module attributes {stable_mosaic.version = 11 : i64} {
  func.func @oskar_layer_kernel(%arg0: i32, %arg1: memref<16x32xbf16, #tpu.memory_space<vmem>>, %arg2: memref<16x1xf32, #tpu.memory_space<vmem>>, %arg3: memref<33x96xbf16, #tpu.memory_space<vmem>>, %arg4: memref<33x64xbf16, #tpu.memory_space<vmem>>, %arg5: memref<134x32xbf16, #tpu.memory_space<vmem>>, %arg6: memref<16x32xf32, #tpu.memory_space<vmem>>) attributes {dimension_semantics = [#tpu.dimension_semantics<arbitrary>], iteration_bounds = array<i64: 1>, scalar_prefetch = 0 : i64, scratch_operands = 0 : i64, tpu.core_type = #tpu.core_type<tc>, window_params = [{transform_indices = @transform_0, window_bounds = array<i64: 16, 32>}, {transform_indices = @transform_1, window_bounds = array<i64: 16, 1>}, {pipeline_mode = #tpu.pipeline_mode<synchronous>, transform_indices = @transform_2, window_bounds = array<i64: 33, 96>}, {pipeline_mode = #tpu.pipeline_mode<synchronous>, transform_indices = @transform_3, window_bounds = array<i64: 33, 64>}, {pipeline_mode = #tpu.pipeline_mode<synchronous>, transform_indices = @transform_4, window_bounds = array<i64: 134, 32>}, {transform_indices = @transform_5, window_bounds = array<i64: 16, 32>}]} {
    %c0 = arith.constant 0 : index
    %c0_0 = arith.constant 0 : index
    %0 = vector.load %arg1[%c0, %c0_0] : memref<16x32xbf16, #tpu.memory_space<vmem>>, vector<16x32xbf16>
    %1 = arith.extf %0 : vector<16x32xbf16> to vector<16x32xf32>
    %c0_1 = arith.constant 0 : index
    %c0_2 = arith.constant 0 : index
    %2 = vector.load %arg2[%c0_1, %c0_2] : memref<16x1xf32, #tpu.memory_space<vmem>>, vector<16x1xf32>
    %c0_3 = arith.constant 0 : index
    %c0_4 = arith.constant 0 : index
    %3 = vector.load %arg3[%c0_3, %c0_4] : memref<33x96xbf16, #tpu.memory_space<vmem>>, vector<32x96xbf16>
    %c32 = arith.constant 32 : index
    %c0_5 = arith.constant 0 : index
    %4 = vector.load %arg3[%c32, %c0_5] : memref<33x96xbf16, #tpu.memory_space<vmem>>, vector<1x96xbf16>
    %5 = arith.extf %4 : vector<1x96xbf16> to vector<1x96xf32>
    %c0_6 = arith.constant 0 : index
    %c0_7 = arith.constant 0 : index
    %6 = vector.load %arg4[%c0_6, %c0_7] : memref<33x64xbf16, #tpu.memory_space<vmem>>, vector<32x64xbf16>
    %c32_8 = arith.constant 32 : index
    %c0_9 = arith.constant 0 : index
    %7 = vector.load %arg4[%c32_8, %c0_9] : memref<33x64xbf16, #tpu.memory_space<vmem>>, vector<1x64xbf16>
    %8 = arith.extf %7 : vector<1x64xbf16> to vector<1x64xf32>
    %c0_10 = arith.constant 0 : index
    %c0_11 = arith.constant 0 : index
    %9 = vector.load %arg5[%c0_10, %c0_11] : memref<134x32xbf16, #tpu.memory_space<vmem>>, vector<32x32xbf16>
    %10 = arith.extf %9 : vector<32x32xbf16> to vector<32x32xf32>
    %c32_12 = arith.constant 32 : index
    %c0_13 = arith.constant 0 : index
    %11 = vector.load %arg5[%c32_12, %c0_13] : memref<134x32xbf16, #tpu.memory_space<vmem>>, vector<32x32xbf16>
    %c64 = arith.constant 64 : index
    %c0_14 = arith.constant 0 : index
    %12 = vector.load %arg5[%c64, %c0_14] : memref<134x32xbf16, #tpu.memory_space<vmem>>, vector<64x32xbf16>
    %c128 = arith.constant 128 : index
    %c0_15 = arith.constant 0 : index
    %13 = vector.load %arg5[%c128, %c0_15] : memref<134x32xbf16, #tpu.memory_space<vmem>>, vector<6x32xbf16>
    %14 = arith.extf %13 : vector<6x32xbf16> to vector<6x32xf32>
    %15 = vector.extract_strided_slice %14 {offsets = [0, 0], sizes = [1, 32], strides = [1, 1]} : vector<6x32xf32> to vector<1x32xf32>
    %16 = vector.extract_strided_slice %14 {offsets = [1, 0], sizes = [1, 32], strides = [1, 1]} : vector<6x32xf32> to vector<1x32xf32>
    %17 = vector.extract_strided_slice %14 {offsets = [2, 0], sizes = [1, 32], strides = [1, 1]} : vector<6x32xf32> to vector<1x32xf32>
    %18 = vector.extract_strided_slice %14 {offsets = [3, 0], sizes = [1, 32], strides = [1, 1]} : vector<6x32xf32> to vector<1x32xf32>
    %19 = vector.extract_strided_slice %14 {offsets = [4, 0], sizes = [1, 32], strides = [1, 1]} : vector<6x32xf32> to vector<1x32xf32>
    %20 = vector.extract_strided_slice %14 {offsets = [5, 0], sizes = [1, 32], strides = [1, 1]} : vector<6x32xf32> to vector<1x32xf32>
    %cst = arith.constant dense<0.000000e+00> : vector<16x96xf32>
    %21 = tpu.matmul %0, %3, %cst {dimension_numbers = #tpu.dot_dimension_numbers<[1], [0], [0], [1], [0, 0, 1, 1], [], []>} : vector<16x32xbf16>, vector<32x96xbf16>, vector<16x96xf32> -> vector<16x96xf32>
    %22 = vector.broadcast %5 : vector<1x96xf32> to vector<16x96xf32>
    %23 = arith.addf %21, %22 : vector<16x96xf32>
    %24 = vector.extract_strided_slice %23 {offsets = [0, 0], sizes = [16, 32], strides = [1, 1]} : vector<16x96xf32> to vector<16x32xf32>
    %cst_16 = arith.constant 0.000000e+00 : f32
    %25 = vector.broadcast %cst_16 : f32 to vector<16x32xf32>
    %26 = arith.cmpf ogt, %24, %25 : vector<16x32xf32>
    %cst_17 = arith.constant 1.000000e+00 : f32
    %27 = vector.broadcast %cst_17 : f32 to vector<16x32xf32>
    %28 = arith.addf %24, %27 : vector<16x32xf32>
    %29 = math.exp %24 : vector<16x32xf32>
    %30 = arith.select %26, %28, %29 : vector<16x32xi1>, vector<16x32xf32>
    %31 = vector.extract_strided_slice %23 {offsets = [0, 32], sizes = [16, 32], strides = [1, 1]} : vector<16x96xf32> to vector<16x32xf32>
    %cst_18 = arith.constant 0.000000e+00 : f32
    %32 = vector.broadcast %cst_18 : f32 to vector<16x32xf32>
    %33 = arith.cmpf ogt, %31, %32 : vector<16x32xf32>
    %cst_19 = arith.constant 1.000000e+00 : f32
    %34 = vector.broadcast %cst_19 : f32 to vector<16x32xf32>
    %35 = arith.addf %31, %34 : vector<16x32xf32>
    %36 = math.exp %31 : vector<16x32xf32>
    %37 = arith.select %33, %35, %36 : vector<16x32xi1>, vector<16x32xf32>
    %38 = vector.broadcast %2 : vector<16x1xf32> to vector<16x32xf32>
    %39 = arith.mulf %37, %38 : vector<16x32xf32>
    %40 = vector.extract_strided_slice %23 {offsets = [0, 64], sizes = [16, 32], strides = [1, 1]} : vector<16x96xf32> to vector<16x32xf32>
    %41 = vector.extract_strided_slice %30 {offsets = [0, 0], sizes = [8, 32], strides = [1, 1]} : vector<16x32xf32> to vector<8x32xf32>
    %42 = vector.extract_strided_slice %39 {offsets = [0, 0], sizes = [8, 32], strides = [1, 1]} : vector<16x32xf32> to vector<8x32xf32>
    %43 = vector.extract_strided_slice %40 {offsets = [0, 0], sizes = [8, 32], strides = [1, 1]} : vector<16x32xf32> to vector<8x32xf32>
    %cst_20 = arith.constant dense<0.000000e+00> : vector<32xf32>
    %44 = vector.multi_reduction <add>, %42, %cst_20 [0] : vector<8x32xf32> to vector<32xf32>
    %45 = vector.shape_cast %44 : vector<32xf32> to vector<1x32xf32>
    %cst_21 = arith.constant dense<0.000000e+00> : vector<32x32xf32>
    %46 = tpu.matmul %42, %43, %cst_21 {dimension_numbers = #tpu.dot_dimension_numbers<[0], [0], [1], [1], [0, 1, 1, 1], [], []>} : vector<8x32xf32>, vector<8x32xf32>, vector<32x32xf32> -> vector<32x32xf32>
    %47 = arith.mulf %46, %10 : vector<32x32xf32>
    %cst_22 = arith.constant dense<0.000000e+00> : vector<8x32xf32>
    %48 = tpu.matmul %41, %47, %cst_22 {dimension_numbers = #tpu.dot_dimension_numbers<[1], [0], [0], [1], [0, 0, 1, 1], [], []>} : vector<8x32xf32>, vector<32x32xf32>, vector<8x32xf32> -> vector<8x32xf32>
    %49 = vector.broadcast %45 : vector<1x32xf32> to vector<8x32xf32>
    %50 = arith.mulf %41, %49 : vector<8x32xf32>
    %cst_23 = arith.constant dense<0.000000e+00> : vector<8x32xf32>
    %51 = tpu.matmul %50, %10, %cst_23 {dimension_numbers = #tpu.dot_dimension_numbers<[1], [0], [0], [1], [0, 0, 1, 1], [], []>} : vector<8x32xf32>, vector<32x32xf32>, vector<8x32xf32> -> vector<8x32xf32>
    %52 = vector.extract_strided_slice %30 {offsets = [8, 0], sizes = [8, 32], strides = [1, 1]} : vector<16x32xf32> to vector<8x32xf32>
    %53 = vector.extract_strided_slice %39 {offsets = [8, 0], sizes = [8, 32], strides = [1, 1]} : vector<16x32xf32> to vector<8x32xf32>
    %54 = vector.extract_strided_slice %40 {offsets = [8, 0], sizes = [8, 32], strides = [1, 1]} : vector<16x32xf32> to vector<8x32xf32>
    %cst_24 = arith.constant dense<0.000000e+00> : vector<32xf32>
    %55 = vector.multi_reduction <add>, %53, %cst_24 [0] : vector<8x32xf32> to vector<32xf32>
    %56 = vector.shape_cast %55 : vector<32xf32> to vector<1x32xf32>
    %cst_25 = arith.constant dense<0.000000e+00> : vector<32x32xf32>
    %57 = tpu.matmul %53, %54, %cst_25 {dimension_numbers = #tpu.dot_dimension_numbers<[0], [0], [1], [1], [0, 1, 1, 1], [], []>} : vector<8x32xf32>, vector<8x32xf32>, vector<32x32xf32> -> vector<32x32xf32>
    %58 = arith.mulf %57, %10 : vector<32x32xf32>
    %cst_26 = arith.constant dense<0.000000e+00> : vector<8x32xf32>
    %59 = tpu.matmul %52, %58, %cst_26 {dimension_numbers = #tpu.dot_dimension_numbers<[1], [0], [0], [1], [0, 0, 1, 1], [], []>} : vector<8x32xf32>, vector<32x32xf32>, vector<8x32xf32> -> vector<8x32xf32>
    %60 = vector.broadcast %56 : vector<1x32xf32> to vector<8x32xf32>
    %61 = arith.mulf %52, %60 : vector<8x32xf32>
    %cst_27 = arith.constant dense<0.000000e+00> : vector<8x32xf32>
    %62 = tpu.matmul %61, %10, %cst_27 {dimension_numbers = #tpu.dot_dimension_numbers<[1], [0], [0], [1], [0, 0, 1, 1], [], []>} : vector<8x32xf32>, vector<32x32xf32>, vector<8x32xf32> -> vector<8x32xf32>
    %63 = tpu.concatenate %48, %59 in 0 : vector<8x32xf32>, vector<8x32xf32> -> vector<16x32xf32>
    %64 = tpu.concatenate %51, %62 in 0 : vector<8x32xf32>, vector<8x32xf32> -> vector<16x32xf32>
    %65 = tpu.reciprocal %64 {approx = true} : vector<16x32xf32> -> vector<16x32xf32>
    %66 = arith.mulf %63, %65 : vector<16x32xf32>
    %67 = arith.truncf %66 : vector<16x32xf32> to vector<16x32xbf16>
    %cst_28 = arith.constant dense<0.000000e+00> : vector<16x32xf32>
    %68 = tpu.matmul %67, %11, %cst_28 {dimension_numbers = #tpu.dot_dimension_numbers<[1], [0], [0], [1], [0, 0, 1, 1], [], []>} : vector<16x32xbf16>, vector<32x32xbf16>, vector<16x32xf32> -> vector<16x32xf32>
    %69 = vector.broadcast %15 : vector<1x32xf32> to vector<16x32xf32>
    %70 = arith.addf %68, %69 : vector<16x32xf32>
    %71 = arith.addf %1, %70 : vector<16x32xf32>
    %cst_29 = arith.constant dense<0.000000e+00> : vector<16xf32>
    %72 = vector.multi_reduction <add>, %71, %cst_29 [1] : vector<16x32xf32> to vector<16xf32>
    %73 = vector.shape_cast %72 : vector<16xf32> to vector<16x1xf32>
    %cst_30 = arith.constant 3.200000e+01 : f32
    %74 = vector.broadcast %cst_30 : f32 to vector<16x1xf32>
    %75 = arith.divf %73, %74 : vector<16x1xf32>
    %76 = vector.broadcast %75 : vector<16x1xf32> to vector<16x32xf32>
    %77 = arith.subf %71, %76 : vector<16x32xf32>
    %78 = arith.mulf %77, %77 : vector<16x32xf32>
    %cst_31 = arith.constant dense<0.000000e+00> : vector<16xf32>
    %79 = vector.multi_reduction <add>, %78, %cst_31 [1] : vector<16x32xf32> to vector<16xf32>
    %80 = vector.shape_cast %79 : vector<16xf32> to vector<16x1xf32>
    %cst_32 = arith.constant 3.200000e+01 : f32
    %81 = vector.broadcast %cst_32 : f32 to vector<16x1xf32>
    %82 = arith.divf %80, %81 : vector<16x1xf32>
    %83 = vector.broadcast %75 : vector<16x1xf32> to vector<16x32xf32>
    %84 = arith.subf %71, %83 : vector<16x32xf32>
    %cst_33 = arith.constant 9.99999996E-13 : f32
    %85 = vector.broadcast %cst_33 : f32 to vector<16x1xf32>
    %86 = arith.addf %82, %85 : vector<16x1xf32>
    %87 = math.rsqrt %86 : vector<16x1xf32>
    %88 = vector.broadcast %87 : vector<16x1xf32> to vector<16x32xf32>
    %89 = arith.mulf %84, %88 : vector<16x32xf32>
    %90 = vector.broadcast %16 : vector<1x32xf32> to vector<16x32xf32>
    %91 = arith.mulf %89, %90 : vector<16x32xf32>
    %92 = vector.broadcast %17 : vector<1x32xf32> to vector<16x32xf32>
    %93 = arith.addf %91, %92 : vector<16x32xf32>
    %94 = arith.truncf %93 : vector<16x32xf32> to vector<16x32xbf16>
    %cst_34 = arith.constant dense<0.000000e+00> : vector<16x64xf32>
    %95 = tpu.matmul %94, %6, %cst_34 {dimension_numbers = #tpu.dot_dimension_numbers<[1], [0], [0], [1], [0, 0, 1, 1], [], []>} : vector<16x32xbf16>, vector<32x64xbf16>, vector<16x64xf32> -> vector<16x64xf32>
    %96 = vector.broadcast %8 : vector<1x64xf32> to vector<16x64xf32>
    %97 = arith.addf %95, %96 : vector<16x64xf32>
    %98 = arith.mulf %97, %97 : vector<16x64xf32>
    %99 = arith.mulf %97, %98 : vector<16x64xf32>
    %cst_35 = arith.constant 4.471500e-02 : f32
    %100 = vector.broadcast %cst_35 : f32 to vector<16x64xf32>
    %101 = arith.mulf %100, %99 : vector<16x64xf32>
    %102 = arith.addf %97, %101 : vector<16x64xf32>
    %cst_36 = arith.constant 0.797884583 : f32
    %103 = vector.broadcast %cst_36 : f32 to vector<16x64xf32>
    %104 = arith.mulf %103, %102 : vector<16x64xf32>
    %105 = math.tanh %104 : vector<16x64xf32>
    %cst_37 = arith.constant 1.000000e+00 : f32
    %106 = vector.broadcast %cst_37 : f32 to vector<16x64xf32>
    %107 = arith.addf %106, %105 : vector<16x64xf32>
    %cst_38 = arith.constant 5.000000e-01 : f32
    %108 = vector.broadcast %cst_38 : f32 to vector<16x64xf32>
    %109 = arith.mulf %108, %107 : vector<16x64xf32>
    %110 = arith.mulf %97, %109 : vector<16x64xf32>
    %111 = arith.truncf %110 : vector<16x64xf32> to vector<16x64xbf16>
    %cst_39 = arith.constant dense<0.000000e+00> : vector<16x32xf32>
    %112 = tpu.matmul %111, %12, %cst_39 {dimension_numbers = #tpu.dot_dimension_numbers<[1], [0], [0], [1], [0, 0, 1, 1], [], []>} : vector<16x64xbf16>, vector<64x32xbf16>, vector<16x32xf32> -> vector<16x32xf32>
    %113 = vector.broadcast %18 : vector<1x32xf32> to vector<16x32xf32>
    %114 = arith.addf %112, %113 : vector<16x32xf32>
    %115 = arith.addf %114, %93 : vector<16x32xf32>
    %cst_40 = arith.constant dense<0.000000e+00> : vector<16xf32>
    %116 = vector.multi_reduction <add>, %115, %cst_40 [1] : vector<16x32xf32> to vector<16xf32>
    %117 = vector.shape_cast %116 : vector<16xf32> to vector<16x1xf32>
    %cst_41 = arith.constant 3.200000e+01 : f32
    %118 = vector.broadcast %cst_41 : f32 to vector<16x1xf32>
    %119 = arith.divf %117, %118 : vector<16x1xf32>
    %120 = vector.broadcast %119 : vector<16x1xf32> to vector<16x32xf32>
    %121 = arith.subf %115, %120 : vector<16x32xf32>
    %122 = arith.mulf %121, %121 : vector<16x32xf32>
    %cst_42 = arith.constant dense<0.000000e+00> : vector<16xf32>
    %123 = vector.multi_reduction <add>, %122, %cst_42 [1] : vector<16x32xf32> to vector<16xf32>
    %124 = vector.shape_cast %123 : vector<16xf32> to vector<16x1xf32>
    %cst_43 = arith.constant 3.200000e+01 : f32
    %125 = vector.broadcast %cst_43 : f32 to vector<16x1xf32>
    %126 = arith.divf %124, %125 : vector<16x1xf32>
    %127 = vector.broadcast %119 : vector<16x1xf32> to vector<16x32xf32>
    %128 = arith.subf %115, %127 : vector<16x32xf32>
    %cst_44 = arith.constant 9.99999996E-13 : f32
    %129 = vector.broadcast %cst_44 : f32 to vector<16x1xf32>
    %130 = arith.addf %126, %129 : vector<16x1xf32>
    %131 = math.rsqrt %130 : vector<16x1xf32>
    %132 = vector.broadcast %131 : vector<16x1xf32> to vector<16x32xf32>
    %133 = arith.mulf %128, %132 : vector<16x32xf32>
    %134 = vector.broadcast %19 : vector<1x32xf32> to vector<16x32xf32>
    %135 = arith.mulf %133, %134 : vector<16x32xf32>
    %136 = vector.broadcast %20 : vector<1x32xf32> to vector<16x32xf32>
    %137 = arith.addf %135, %136 : vector<16x32xf32>
    %c0_45 = arith.constant 0 : index
    %c0_46 = arith.constant 0 : index
    %138 = vector.load %arg6[%c0_45, %c0_46] : memref<16x32xf32, #tpu.memory_space<vmem>>, vector<16x32xf32>
    tpu.vector_store %arg6[%c0_45, %c0_46], %137 {strides = array<i32>} : memref<16x32xf32, #tpu.memory_space<vmem>>, vector<16x32xf32>,
    return
  }
  func.func @transform_0(%arg0: i32) -> (i32, i32) {
    %c0_i32 = arith.constant 0 : i32
    %c0_i32_0 = arith.constant 0 : i32
    return %arg0, %c0_i32 : i32, i32
  }
  func.func @transform_1(%arg0: i32) -> (i32, i32) {
    %c0_i32 = arith.constant 0 : i32
    %c0_i32_0 = arith.constant 0 : i32
    return %arg0, %c0_i32 : i32, i32
  }
  func.func @transform_2(%arg0: i32) -> (i32, i32) {
    %c0_i32 = arith.constant 0 : i32
    %c0_i32_0 = arith.constant 0 : i32
    %c0_i32_1 = arith.constant 0 : i32
    return %c0_i32, %c0_i32_0 : i32, i32
  }
  func.func @transform_3(%arg0: i32) -> (i32, i32) {
    %c0_i32 = arith.constant 0 : i32
    %c0_i32_0 = arith.constant 0 : i32
    %c0_i32_1 = arith.constant 0 : i32
    return %c0_i32, %c0_i32_0 : i32, i32
  }
  func.func @transform_4(%arg0: i32) -> (i32, i32) {
    %c0_i32 = arith.constant 0 : i32
    %c0_i32_0 = arith.constant 0 : i32
    %c0_i32_1 = arith.constant 0 : i32
    return %c0_i32, %c0_i32_0 : i32, i32
  }
  func.func @transform_5(%arg0: i32) -> (i32, i32) {
    %c0_i32 = arith.constant 0 : i32
    %c0_i32_0 = arith.constant 0 : i32
    return %arg0, %c0_i32 : i32, i32
  }
}

</mosaic_0001>

<llo_original>
// kernel: oskar_layer.1
$region0: #{oskar_layer.1}
  #allocation0 [shape = 'u32[]', space=smem, size = 0x4, offset = 0x4, fixed_abs, tag = 'smem constant byte address 0x4 - core index']
  #allocation1 [shape = 'u32[144,128]{1,0:T(1,128)}', space=vmem, size = 0x12000, scoped, tag = 'internal scratch']
  %s0 = inlined_call_operand.vmem [shape: bf16[16,32], index: 0, kind: input, shape index: {}]
  %s1 = inlined_call_operand.vmem [shape: f32[16,1], index: 1, kind: input, shape index: {}]
  %s2 = inlined_call_operand.vmem [shape: bf16[33,96], index: 2, kind: input, shape index: {}]
  %s3 = inlined_call_operand.vmem [shape: bf16[33,64], index: 3, kind: input, shape index: {}]
  %s4 = inlined_call_operand.vmem [shape: bf16[134,32], index: 4, kind: input, shape index: {}]
  %s5 = inlined_call_operand.hbm [shape: f32[16,32], index: 5, kind: output, shape index: {}]
  %s6 = sld [smem:[#allocation0]]
  $region30: #{oskar_layer.1} parent=0
    _
  %s8 = ssub.s32 1, %s6
  %s9 = scalar_select 0, %s8, %s6
  $region1: #{oskar_layer.1} parent=0
    #allocation2 [shape = 'u8[8192]{0}', space=vmem, size = 0x2000, scoped, tag = 'output window, operand 0, single buffered']
    #allocation3 [shape = 's32[1]{0}', space=sflag, size = 0x4, scoped, tag = 'scoped memory for oskar_layer.1']
    %10 = vsyncpa [#allocation3], 0
    // Predicated region
    $region2: #{oskar_layer.1} parent=1 // pred_check
      _
    $region3: #{oskar_layer.1} parent=1 // pred_check_branch
      %12 = sbr.rel (0) target = $region5
    $region4: #{oskar_layer.1} parent=1 // pred_region
      _
    $region5: #{oskar_layer.1} parent=1 // pred_fallthru
      _
    // Predicated region
    $region6: #{oskar_layer.1} parent=1 // pred_check
      _
    $region7: #{oskar_layer.1} parent=1 // pred_check_branch
      %14 = sbr.rel (0) target = $region9
    $region8: #{oskar_layer.1} parent=1 // pred_region
      _
    $region9: #{oskar_layer.1} parent=1 // pred_fallthru
      _
    // Predicated region
    $region10: #{oskar_layer.1} parent=1 // pred_check
      _
    $region11: #{oskar_layer.1} parent=1 // pred_check_branch
      %16 = sbr.rel (0) target = $region13
    $region12: #{oskar_layer.1} parent=1 // pred_region
      _
    $region13: #{oskar_layer.1} parent=1 // pred_fallthru
      _
    // Predicated region
    $region14: #{oskar_layer.1} parent=1 // pred_check
      _
    $region15: #{oskar_layer.1} parent=1 // pred_check_branch
      %18 = sbr.rel (0) target = $region17
    $region16: #{oskar_layer.1} parent=1 // pred_region
      _
    $region17: #{oskar_layer.1} parent=1 // pred_fallthru
      _
    // Predicated region
    $region18: #{oskar_layer.1} parent=1 // pred_check
      _
    $region19: #{oskar_layer.1} parent=1 // pred_check_branch
      %20 = sbr.rel (0) target = $region21
    $region20: #{oskar_layer.1} parent=1 // pred_region
      _
    $region21: #{oskar_layer.1} parent=1 // pred_fallthru
      _
    %v22 = vld [vmem:[%s0] sm:$0xf]
    %v23 = vld [vmem:[%s0 + $0x4] sm:$0xf]
    %v24 = vunpack.c.l.bf16 %v22
    %v25 = vunpack.c.l.bf16 %v23
    %v26 = vld [vmem:[%s1] sm:$0xff]
    %v27 = vld [vmem:[%s1 + $0x8] sm:$0xff]
    %v28 = vld [vmem:[%s2] sm:$0xf]
    %v29 = vld [vmem:[%s2 + $0x4] sm:$0xf]
    %v30 = vld [vmem:[%s2 + $0x8] sm:$0xf]
    %v31 = vld [vmem:[%s2 + $0xc] sm:$0xf]
    %v32 = vld [vmem:[%s2 + $0x10] sm:$0x1]
    %v33 = vunpack.c.l.bf16 %v32
    %v34 = vld [vmem:[%s3] sm:$0xf]
    %v35 = vld [vmem:[%s3 + $0x4] sm:$0xf]
    %v36 = vld [vmem:[%s3 + $0x8] sm:$0xf]
    %v37 = vld [vmem:[%s3 + $0xc] sm:$0xf]
    %v38 = vld [vmem:[%s3 + $0x10] sm:$0x1]
    %v39 = vunpack.c.l.bf16 %v38
    %v40 = vld [vmem:[%s4] sm:$0xf]
    %v41 = vld [vmem:[%s4 + $0x4] sm:$0xf]
    %v42 = vld [vmem:[%s4 + $0x8] sm:$0xf]
    %v43 = vld [vmem:[%s4 + $0xc] sm:$0xf]
    %v44 = vunpack.c.l.bf16 %v40
    %v45 = vunpack.c.l.bf16 %v41
    %v46 = vunpack.c.l.bf16 %v42
    %v47 = vunpack.c.l.bf16 %v43
    %v48 = vld [vmem:[%s4 + $0x10] sm:$0xf]
    %v49 = vld [vmem:[%s4 + $0x14] sm:$0xf]
    %v50 = vld [vmem:[%s4 + $0x18] sm:$0xf]
    %v51 = vld [vmem:[%s4 + $0x1c] sm:$0xf]
    %v52 = vld [vmem:[%s4 + $0x20] sm:$0xf]
    %v53 = vld [vmem:[%s4 + $0x24] sm:$0xf]
    %v54 = vld [vmem:[%s4 + $0x28] sm:$0xf]
    %v55 = vld [vmem:[%s4 + $0x2c] sm:$0xf]
    %v56 = vld [vmem:[%s4 + $0x30] sm:$0xf]
    %v57 = vld [vmem:[%s4 + $0x34] sm:$0xf]
    %v58 = vld [vmem:[%s4 + $0x38] sm:$0xf]
    %v59 = vld [vmem:[%s4 + $0x3c] sm:$0xf]
    %v60 = vld [vmem:[%s4 + $0x40] sm:$0x7]
    %v61 = vunpack.c.l.bf16 %v60
    %v62 = vlaneseq
    %v63 = vshrl.u32 %v62, 7
    %v64 = vsub.s32 0, %v63
    %v65 = vrot.slane %v33, %v64
    %v68 = vunpack.c.l.b16 %v22
    %v69 = vunpack.c.l.b16 %v23
    %v70 = vpack.c.b16 %v69, %v68
    %v75 = vunpack.c.l.b16 %v28
    %v76 = vunpack.c.l.b16 %v29
    %v77 = vunpack.c.l.b16 %v30
    %v78 = vunpack.c.l.b16 %v31
    %v79 = vpack.c.b16 %v76, %v75
    %v80 = vpack.c.b16 %v78, %v77
    %vm83 = vcmask 261120
    %v85 = vsel %vm83, %v70, 0
    %87 = vmatprep.subr.bf16.mxu0 0
    %88 = vmatpush1.bf16.msra.mxu0 %v79
    %89 = vmatprep.subr.bf16.mxu0 0
    %90 = vmatpush1.bf16.msra.mxu0 %v80
    %91 = vmatprep.subr.bf16.mxu0 0
    %92 = vmatpush1.bf16.msra.mxu0 0
    %93 = vmatprep.subr.bf16.mxu0 0
    %94 = vmatpush1.bf16.msra.mxu0 0
    %95 = vmatprep.subr.bf16.mxu0 0
    %96 = vmatpush1.bf16.msra.mxu0 0
    %97 = vmatprep.subr.bf16.mxu0 0
    %98 = vmatpush1.bf16.msra.mxu0 0
    %99 = vmatprep.subr.bf16.mxu0 0
    %100 = vmatpush1.bf16.msra.mxu0 0
    %101 = vmatprep.subr.bf16.mxu0 0
    %102 = vmatpush1.bf16.msra.mxu0 0
    %103 = vmatprep.subr.bf16.mxu0 0
    %104 = vmatpush1.bf16.msra.mxu0 0
    %105 = vmatprep.subr.bf16.mxu0 0
    %106 = vmatpush1.bf16.msra.mxu0 0
    %107 = vmatprep.subr.bf16.mxu0 0
    %108 = vmatpush1.bf16.msra.mxu0 0
    %109 = vmatprep.subr.bf16.mxu0 0
    %110 = vmatpush1.bf16.msra.mxu0 0
    %111 = vmatprep.subr.bf16.mxu0 0
    %112 = vmatpush1.bf16.msra.mxu0 0
    %113 = vmatprep.subr.bf16.mxu0 0
    %114 = vmatpush1.bf16.msra.mxu0 0
    %115 = vmatprep.subr.bf16.mxu0 0
    %116 = vmatpush1.bf16.msra.mxu0 0
    %117 = vmatprep.subr.bf16.mxu0 0
    %118 = vmatpush1.bf16.msra.mxu0 0
    %119 = vmatprep.mubr.bf16.mxu0 0
    %120 = vmatmul.mubr.bf16.gmra.mrb[0].mxu0 %v85
    %v121 = vpop.f32.mrb[0].mxu0
    %v122 = vadd.f32 %v65, %v121
    %v123 = vpop.f32.mrb[0].mxu0
    %v124 = vpop.f32.mrb[0].mxu0
    %v125 = vadd.f32 %v65, %v124
    %v126 = vpop.f32.mrb[0].mxu0
    %127 = vdwg.mxu0
    %vm128 = vcmp.gt.f32.partialorder %v122, 0.0
    %vm129 = vcmp.gt.f32.partialorder %v125, 0.0
    %v130 = vadd.f32 %v122, 1.0
    %v131 = vadd.f32 %v125, 1.0
    %v132 = vmul.f32 %v122, 1.442695
    %v133 = vpow.pop %v132
    %v134 = vmul.f32 %v125, 1.442695
    %v135 = vpow.pop %v134
    %v136 = vsel %vm128, %v130, %v133
    %v137 = vsel %vm129, %v131, %v135
    %139 = vset.pattern.permute.xlu0 0
    %140 = vperm.xlu0 %139, %v26
    %v141 = vpop.permute.xlu0 %140
    %144 = vset.pattern.permute.xlu0 0
    %145 = vperm.xlu0 %144, %v27
    %v146 = vpop.permute.xlu0 %145
    %v148 = vmul.f32 %v136, %v141
    %v149 = vmul.f32 %v137, %v146
    %vm150 = vcmask 523520
    %v151 = vsel %vm150, %v148, 0.0
    %v152 = vrot.slane %v151, 4
    %v153 = vadd.f32 %v151, %v152
    %v154 = vrot.slane %v153, 2
    %v155 = vadd.f32 %v153, %v154
    %v156 = vrot.slane %v155, 1
    %v157 = vadd.f32 %v155, %v156
    %159 = vrot.lane.b32.xlu0 %v148, 96
    %v160 = vpop.permute.xlu0 %159
    %162 = vxpose.xlu0.b32.start [1/16] %v160, 128
    %163 = vxpose.xlu0.b32.cont [2/16] 0.0, 128
    %164 = vxpose.xlu0.b32.cont [3/16] 0.0, 128
    %165 = vxpose.xlu0.b32.cont [4/16] 0.0, 128
    %166 = vxpose.xlu0.b32.cont [5/16] 0.0, 128
    %167 = vxpose.xlu0.b32.cont [6/16] 0.0, 128
    %168 = vxpose.xlu0.b32.cont [7/16] 0.0, 128
    %169 = vxpose.xlu0.b32.cont [8/16] 0.0, 128
    %170 = vxpose.xlu0.b32.cont [9/16] 0.0, 128
    %171 = vxpose.xlu0.b32.cont [10/16] 0.0, 128
    %172 = vxpose.xlu0.b32.cont [11/16] 0.0, 128
    %173 = vxpose.xlu0.b32.cont [12/16] 0.0, 128
    %174 = vxpose.xlu0.b32.cont [13/16] 0.0, 128
    %175 = vxpose.xlu0.b32.cont [14/16] 0.0, 128
    %176 = vxpose.xlu0.b32.cont [15/16] 0.0, 128
    %177 = vxpose.xlu0.b32.end [16/16] 0.0, 128
    %v178 = vpop.trf.xlu0
    %v179 = vpop.trf.xlu0
    %v180 = vpop.trf.xlu0
    %v181 = vpop.trf.xlu0
    %v182 = vpop.trf.xlu0
    %v183 = vpop.trf.xlu0
    %v184 = vpop.trf.xlu0
    %v185 = vpop.trf.xlu0
    %v186 = vpop.trf.xlu0
    %v187 = vpop.trf.xlu0
    %v188 = vpop.trf.xlu0
    %v189 = vpop.trf.xlu0
    %v190 = vpop.trf.xlu0
    %v191 = vpop.trf.xlu0
    %v192 = vpop.trf.xlu0
    %v193 = vpop.trf.xlu0
    %195 = vrot.lane.b32.xlu0 %v122, 64
    %v196 = vpop.permute.xlu0 %195
    %vm198 = vcmask 64512
    %v200 = vsel %vm198, %v178, 0
    %v203 = vsel %vm198, %v179, 0
    %v206 = vsel %vm198, %v180, 0
    %v209 = vsel %vm198, %v181, 0
    %211 = vmatprep.subr.mxu0 0.0
    %212 = vmatpush1.msra.mxu0 %v196
    %213 = vmatprep.subr.mxu0 0.0
    %214 = vmatpush1.msra.mxu0 0.0
    %215 = vmatprep.subr.mxu0 0.0
    %216 = vmatpush1.msra.mxu0 0.0
    %217 = vmatprep.subr.mxu0 0.0
    %218 = vmatpush1.msra.mxu0 0.0
    %219 = vmatprep.subr.mxu0 0.0
    %220 = vmatpush1.msra.mxu0 0.0
    %221 = vmatprep.subr.mxu0 0.0
    %222 = vmatpush1.msra.mxu0 0.0
    %223 = vmatprep.subr.mxu0 0.0
    %224 = vmatpush1.msra.mxu0 0.0
    %225 = vmatprep.subr.mxu0 0.0
    %226 = vmatpush1.msra.mxu0 0.0
    %227 = vmatprep.subr.mxu0 0.0
    %228 = vmatpush1.msra.mxu0 0.0
    %229 = vmatprep.subr.mxu0 0.0
    %230 = vmatpush1.msra.mxu0 0.0
    %231 = vmatprep.subr.mxu0 0.0
    %232 = vmatpush1.msra.mxu0 0.0
    %233 = vmatprep.subr.mxu0 0.0
    %234 = vmatpush1.msra.mxu0 0.0
    %235 = vmatprep.subr.mxu0 0.0
    %236 = vmatpush1.msra.mxu0 0.0
    %237 = vmatprep.subr.mxu0 0.0
    %238 = vmatpush1.msra.mxu0 0.0
    %239 = vmatprep.subr.mxu0 0.0
    %240 = vmatpush1.msra.mxu0 0.0
    %241 = vmatprep.subr.mxu0 0.0
    %242 = vmatpush1.msra.mxu0 0.0
    %243 = vmatprep.subr.mxu0 0.0
    %244 = vmatpush1.msra.mxu0 0.0
    %245 = vmatprep.subr.mxu0 0.0
    %246 = vmatpush1.msra.mxu0 0.0
    %247 = vmatprep.subr.mxu0 0.0
    %248 = vmatpush1.msra.mxu0 0.0
    %249 = vmatprep.subr.mxu0 0.0
    %250 = vmatpush1.msra.mxu0 0.0
    %251 = vmatprep.subr.mxu0 0.0
    %252 = vmatpush1.msra.mxu0 0.0
    %253 = vmatprep.subr.mxu0 0.0
    %254 = vmatpush1.msra.mxu0 0.0
    %255 = vmatprep.subr.mxu0 0.0
    %256 = vmatpush1.msra.mxu0 0.0
    %257 = vmatprep.subr.mxu0 0.0
    %258 = vmatpush1.msra.mxu0 0.0
    %259 = vmatprep.subr.mxu0 0.0
    %260 = vmatpush1.msra.mxu0 0.0
    %261 = vmatprep.subr.mxu0 0.0
    %262 = vmatpush1.msra.mxu0 0.0
    %263 = vmatprep.subr.mxu0 0.0
    %264 = vmatpush1.msra.mxu0 0.0
    %265 = vmatprep.subr.mxu0 0.0
    %266 = vmatpush1.msra.mxu0 0.0
    %267 = vmatprep.subr.mxu0 0.0
    %268 = vmatpush1.msra.mxu0 0.0
    %269 = vmatprep.subr.mxu0 0.0
    %270 = vmatpush1.msra.mxu0 0.0
    %271 = vmatprep.subr.mxu0 0.0
    %272 = vmatpush1.msra.mxu0 0.0
    %273 = vmatprep.subr.mxu0 0.0
    %274 = vmatpush1.msra.mxu0 0.0
    %275 = vmatprep.mubr.f32.mxu0 0.0
    %276 = vmatmul.mubr.f32.gmra.mrb[0].mxu0 %v200
    %v277 = vpop.f32.mrb[0].mxu0
    %v278 = vadd.f32 0.0, %v277
    %v279 = vpop.f32.mrb[0].mxu0
    %280 = vmatprep.mubr.f32.mxu0 0.0
    %281 = vmatmul.mubr.f32.gmra.mrb[0].mxu0 %v203
    %v282 = vpop.f32.mrb[0].mxu0
    %v283 = vadd.f32 0.0, %v282
    %v284 = vpop.f32.mrb[0].mxu0
    %285 = vmatprep.mubr.f32.mxu0 0.0
    %286 = vmatmul.mubr.f32.gmra.mrb[0].mxu0 %v206
    %v287 = vpop.f32.mrb[0].mxu0
    %v288 = vadd.f32 0.0, %v287
    %v289 = vpop.f32.mrb[0].mxu0
    %290 = vmatprep.mubr.f32.mxu0 0.0
    %291 = vmatmul.mubr.f32.gmra.mrb[0].mxu0 %v209
    %v292 = vpop.f32.mrb[0].mxu0
    %v293 = vadd.f32 0.0, %v292
    %v294 = vpop.f32.mrb[0].mxu0
    %295 = vdwg.mxu0
    %v296 = vmul.f32 %v278, %v44
    %v297 = vmul.f32 %v283, %v45
    %v298 = vmul.f32 %v288, %v46
    %v299 = vmul.f32 %v293, %v47
    %v301 = vsel %vm83, %v136, 0
    %303 = vmatprep.subr.mxu0 0.0
    %304 = vmatpush1.msra.mxu0 %v296
    %305 = vmatprep.subr.mxu0 0.0
    %306 = vmatpush1.msra.mxu0 %v297
    %307 = vmatprep.subr.mxu0 0.0
    %308 = vmatpush1.msra.mxu0 %v298
    %309 = vmatprep.subr.mxu0 0.0
    %310 = vmatpush1.msra.mxu0 %v299
    %311 = vmatprep.subr.mxu0 0.0
    %312 = vmatpush1.msra.mxu0 0.0
    %313 = vmatprep.subr.mxu0 0.0
    %314 = vmatpush1.msra.mxu0 0.0
    %315 = vmatprep.subr.mxu0 0.0
    %316 = vmatpush1.msra.mxu0 0.0
    %317 = vmatprep.subr.mxu0 0.0
    %318 = vmatpush1.msra.mxu0 0.0
    %319 = vmatprep.subr.mxu0 0.0
    %320 = vmatpush1.msra.mxu0 0.0
    %321 = vmatprep.subr.mxu0 0.0
    %322 = vmatpush1.msra.mxu0 0.0
    %323 = vmatprep.subr.mxu0 0.0
    %324 = vmatpush1.msra.mxu0 0.0
    %325 = vmatprep.subr.mxu0 0.0
    %326 = vmatpush1.msra.mxu0 0.0
    %327 = vmatprep.subr.mxu0 0.0
    %328 = vmatpush1.msra.mxu0 0.0
    %329 = vmatprep.subr.mxu0 0.0
    %330 = vmatpush1.msra.mxu0 0.0
    %331 = vmatprep.subr.mxu0 0.0
    %332 = vmatpush1.msra.mxu0 0.0
    %333 = vmatprep.subr.mxu0 0.0
    %334 = vmatpush1.msra.mxu0 0.0
    %335 = vmatprep.subr.mxu0 0.0
    %336 = vmatpush1.msra.mxu0 0.0
    %337 = vmatprep.subr.mxu0 0.0
    %338 = vmatpush1.msra.mxu0 0.0
    %339 = vmatprep.subr.mxu0 0.0
    %340 = vmatpush1.msra.mxu0 0.0
    %341 = vmatprep.subr.mxu0 0.0
    %342 = vmatpush1.msra.mxu0 0.0
    %343 = vmatprep.subr.mxu0 0.0
    %344 = vmatpush1.msra.mxu0 0.0
    %345 = vmatprep.subr.mxu0 0.0
    %346 = vmatpush1.msra.mxu0 0.0
    %347 = vmatprep.subr.mxu0 0.0
    %348 = vmatpush1.msra.mxu0 0.0
    %349 = vmatprep.subr.mxu0 0.0
    %350 = vmatpush1.msra.mxu0 0.0
    %351 = vmatprep.subr.mxu0 0.0
    %352 = vmatpush1.msra.mxu0 0.0
    %353 = vmatprep.subr.mxu0 0.0
    %354 = vmatpush1.msra.mxu0 0.0
    %355 = vmatprep.subr.mxu0 0.0
    %356 = vmatpush1.msra.mxu0 0.0
    %357 = vmatprep.subr.mxu0 0.0
    %358 = vmatpush1.msra.mxu0 0.0
    %359 = vmatprep.subr.mxu0 0.0
    %360 = vmatpush1.msra.mxu0 0.0
    %361 = vmatprep.subr.mxu0 0.0
    %362 = vmatpush1.msra.mxu0 0.0
    %363 = vmatprep.subr.mxu0 0.0
    %364 = vmatpush1.msra.mxu0 0.0
    %365 = vmatprep.subr.mxu0 0.0
    %366 = vmatpush1.msra.mxu0 0.0
    %367 = vmatprep.mubr.f32.mxu0 0.0
    %368 = vmatmul.mubr.f32.gmra.mrb[0].mxu0 %v301
    %v369 = vpop.f32.mrb[0].mxu0
    %v370 = vadd.f32 0.0, %v369
    %v371 = vpop.f32.mrb[0].mxu0
    %372 = vdwg.mxu0
    %374 = vrot.lane.b32.xlu0 %v157, 96
    %v375 = vpop.permute.xlu0 %374
    %v377 = vmul.f32 %v136, %v375
    %v379 = vsel %vm83, %v377, 0
    %381 = vmatprep.subr.mxu0 0.0
    %382 = vmatpush1.msra.mxu0 %v44
    %383 = vmatprep.subr.mxu0 0.0
    %384 = vmatpush1.msra.mxu0 %v45
    %385 = vmatprep.subr.mxu0 0.0
    %386 = vmatpush1.msra.mxu0 %v46
    %387 = vmatprep.subr.mxu0 0.0
    %388 = vmatpush1.msra.mxu0 %v47
    %389 = vmatprep.subr.mxu0 0.0
    %390 = vmatpush1.msra.mxu0 0.0
    %391 = vmatprep.subr.mxu0 0.0
    %392 = vmatpush1.msra.mxu0 0.0
    %393 = vmatprep.subr.mxu0 0.0
    %394 = vmatpush1.msra.mxu0 0.0
    %395 = vmatprep.subr.mxu0 0.0
    %396 = vmatpush1.msra.mxu0 0.0
    %397 = vmatprep.subr.mxu0 0.0
    %398 = vmatpush1.msra.mxu0 0.0
    %399 = vmatprep.subr.mxu0 0.0
    %400 = vmatpush1.msra.mxu0 0.0
    %401 = vmatprep.subr.mxu0 0.0
    %402 = vmatpush1.msra.mxu0 0.0
    %403 = vmatprep.subr.mxu0 0.0
    %404 = vmatpush1.msra.mxu0 0.0
    %405 = vmatprep.subr.mxu0 0.0
    %406 = vmatpush1.msra.mxu0 0.0
    %407 = vmatprep.subr.mxu0 0.0
    %408 = vmatpush1.msra.mxu0 0.0
    %409 = vmatprep.subr.mxu0 0.0
    %410 = vmatpush1.msra.mxu0 0.0
    %411 = vmatprep.subr.mxu0 0.0
    %412 = vmatpush1.msra.mxu0 0.0
    %413 = vmatprep.subr.mxu0 0.0
    %414 = vmatpush1.msra.mxu0 0.0
    %415 = vmatprep.subr.mxu0 0.0
    %416 = vmatpush1.msra.mxu0 0.0
    %417 = vmatprep.subr.mxu0 0.0
    %418 = vmatpush1.msra.mxu0 0.0
    %419 = vmatprep.subr.mxu0 0.0
    %420 = vmatpush1.msra.mxu0 0.0
    %421 = vmatprep.subr.mxu0 0.0
    %422 = vmatpush1.msra.mxu0 0.0
    %423 = vmatprep.subr.mxu0 0.0
    %424 = vmatpush1.msra.mxu0 0.0
    %425 = vmatprep.subr.mxu0 0.0
    %426 = vmatpush1.msra.mxu0 0.0
    %427 = vmatprep.subr.mxu0 0.0
    %428 = vmatpush1.msra.mxu0 0.0
    %429 = vmatprep.subr.mxu0 0.0
    %430 = vmatpush1.msra.mxu0 0.0
    %431 = vmatprep.subr.mxu0 0.0
    %432 = vmatpush1.msra.mxu0 0.0
    %433 = vmatprep.subr.mxu0 0.0
    %434 = vmatpush1.msra.mxu0 0.0
    %435 = vmatprep.subr.mxu0 0.0
    %436 = vmatpush1.msra.mxu0 0.0
    %437 = vmatprep.subr.mxu0 0.0
    %438 = vmatpush1.msra.mxu0 0.0
    %439 = vmatprep.subr.mxu0 0.0
    %440 = vmatpush1.msra.mxu0 0.0
    %441 = vmatprep.subr.mxu0 0.0
    %442 = vmatpush1.msra.mxu0 0.0
    %443 = vmatprep.subr.mxu0 0.0
    %444 = vmatpush1.msra.mxu0 0.0
    %445 = vmatprep.mubr.f32.mxu0 0.0
    %446 = vmatmul.mubr.f32.gmra.mrb[0].mxu0 %v379
    %v447 = vpop.f32.mrb[0].mxu0
    %v448 = vadd.f32 0.0, %v447
    %v449 = vpop.f32.mrb[0].mxu0
    %450 = vdwg.mxu0
    %v451 = vsel %vm150, %v149, 0.0
    %v452 = vrot.slane %v451, 4
    %v453 = vadd.f32 %v451, %v452
    %v454 = vrot.slane %v453, 2
    %v455 = vadd.f32 %v453, %v454
    %v456 = vrot.slane %v455, 1
    %v457 = vadd.f32 %v455, %v456
    %459 = vrot.lane.b32.xlu0 %v149, 96
    %v460 = vpop.permute.xlu0 %459
    %462 = vxpose.xlu0.b32.start [1/16] %v460, 128
    %463 = vxpose.xlu0.b32.cont [2/16] 0.0, 128
    %464 = vxpose.xlu0.b32.cont [3/16] 0.0, 128
    %465 = vxpose.xlu0.b32.cont [4/16] 0.0, 128
    %466 = vxpose.xlu0.b32.cont [5/16] 0.0, 128
    %467 = vxpose.xlu0.b32.cont [6/16] 0.0, 128
    %468 = vxpose.xlu0.b32.cont [7/16] 0.0, 128
    %469 = vxpose.xlu0.b32.cont [8/16] 0.0, 128
    %470 = vxpose.xlu0.b32.cont [9/16] 0.0, 128
    %471 = vxpose.xlu0.b32.cont [10/16] 0.0, 128
    %472 = vxpose.xlu0.b32.cont [11/16] 0.0, 128
    %473 = vxpose.xlu0.b32.cont [12/16] 0.0, 128
    %474 = vxpose.xlu0.b32.cont [13/16] 0.0, 128
    %475 = vxpose.xlu0.b32.cont [14/16] 0.0, 128
    %476 = vxpose.xlu0.b32.cont [15/16] 0.0, 128
    %477 = vxpose.xlu0.b32.end [16/16] 0.0, 128
    %v478 = vpop.trf.xlu0
    %v479 = vpop.trf.xlu0
    %v480 = vpop.trf.xlu0
    %v481 = vpop.trf.xlu0
    %v482 = vpop.trf.xlu0
    %v483 = vpop.trf.xlu0
    %v484 = vpop.trf.xlu0
    %v485 = vpop.trf.xlu0
    %v486 = vpop.trf.xlu0
    %v487 = vpop.trf.xlu0
    %v488 = vpop.trf.xlu0
    %v489 = vpop.trf.xlu0
    %v490 = vpop.trf.xlu0
    %v491 = vpop.trf.xlu0
    %v492 = vpop.trf.xlu0
    %v493 = vpop.trf.xlu0
    %495 = vrot.lane.b32.xlu0 %v125, 64
    %v496 = vpop.permute.xlu0 %495
    %v499 = vsel %vm198, %v478, 0
    %v502 = vsel %vm198, %v479, 0
    %v505 = vsel %vm198, %v480, 0
    %v508 = vsel %vm198, %v481, 0
    %510 = vmatprep.subr.mxu0 0.0
    %511 = vmatpush1.msra.mxu0 %v496
    %512 = vmatprep.subr.mxu0 0.0
    %513 = vmatpush1.msra.mxu0 0.0
    %514 = vmatprep.subr.mxu0 0.0
    %515 = vmatpush1.msra.mxu0 0.0
    %516 = vmatprep.subr.mxu0 0.0
    %517 = vmatpush1.msra.mxu0 0.0
    %518 = vmatprep.subr.mxu0 0.0
    %519 = vmatpush1.msra.mxu0 0.0
    %520 = vmatprep.subr.mxu0 0.0
    %521 = vmatpush1.msra.mxu0 0.0
    %522 = vmatprep.subr.mxu0 0.0
    %523 = vmatpush1.msra.mxu0 0.0
    %524 = vmatprep.subr.mxu0 0.0
    %525 = vmatpush1.msra.mxu0 0.0
    %526 = vmatprep.subr.mxu0 0.0
    %527 = vmatpush1.msra.mxu0 0.0
    %528 = vmatprep.subr.mxu0 0.0
    %529 = vmatpush1.msra.mxu0 0.0
    %530 = vmatprep.subr.mxu0 0.0
    %531 = vmatpush1.msra.mxu0 0.0
    %532 = vmatprep.subr.mxu0 0.0
    %533 = vmatpush1.msra.mxu0 0.0
    %534 = vmatprep.subr.mxu0 0.0
    %535 = vmatpush1.msra.mxu0 0.0
    %536 = vmatprep.subr.mxu0 0.0
    %537 = vmatpush1.msra.mxu0 0.0
    %538 = vmatprep.subr.mxu0 0.0
    %539 = vmatpush1.msra.mxu0 0.0
    %540 = vmatprep.subr.mxu0 0.0
    %541 = vmatpush1.msra.mxu0 0.0
    %542 = vmatprep.subr.mxu0 0.0
    %543 = vmatpush1.msra.mxu0 0.0
    %544 = vmatprep.subr.mxu0 0.0
    %545 = vmatpush1.msra.mxu0 0.0
    %546 = vmatprep.subr.mxu0 0.0
    %547 = vmatpush1.msra.mxu0 0.0
    %548 = vmatprep.subr.mxu0 0.0
    %549 = vmatpush1.msra.mxu0 0.0
    %550 = vmatprep.subr.mxu0 0.0
    %551 = vmatpush1.msra.mxu0 0.0
    %552 = vmatprep.subr.mxu0 0.0
    %553 = vmatpush1.msra.mxu0 0.0
    %554 = vmatprep.subr.mxu0 0.0
    %555 = vmatpush1.msra.mxu0 0.0
    %556 = vmatprep.subr.mxu0 0.0
    %557 = vmatpush1.msra.mxu0 0.0
    %558 = vmatprep.subr.mxu0 0.0
    %559 = vmatpush1.msra.mxu0 0.0
    %560 = vmatprep.subr.mxu0 0.0
    %561 = vmatpush1.msra.mxu0 0.0
    %562 = vmatprep.subr.mxu0 0.0
    %563 = vmatpush1.msra.mxu0 0.0
    %564 = vmatprep.subr.mxu0 0.0
    %565 = vmatpush1.msra.mxu0 0.0
    %566 = vmatprep.subr.mxu0 0.0
    %567 = vmatpush1.msra.mxu0 0.0
    %568 = vmatprep.subr.mxu0 0.0
    %569 = vmatpush1.msra.mxu0 0.0
    %570 = vmatprep.subr.mxu0 0.0
    %571 = vmatpush1.msra.mxu0 0.0
    %572 = vmatprep.subr.mxu0 0.0
    %573 = vmatpush1.msra.mxu0 0.0
    %574 = vmatprep.mubr.f32.mxu0 0.0
    %575 = vmatmul.mubr.f32.gmra.mrb[0].mxu0 %v499
    %v576 = vpop.f32.mrb[0].mxu0
    %v577 = vadd.f32 0.0, %v576
    %v578 = vpop.f32.mrb[0].mxu0
    %579 = vmatprep.mubr.f32.mxu0 0.0
    %580 = vmatmul.mubr.f32.gmra.mrb[0].mxu0 %v502
    %v581 = vpop.f32.mrb[0].mxu0
    %v582 = vadd.f32 0.0, %v581
    %v583 = vpop.f32.mrb[0].mxu0
    %584 = vmatprep.mubr.f32.mxu0 0.0
    %585 = vmatmul.mubr.f32.gmra.mrb[0].mxu0 %v505
    %v586 = vpop.f32.mrb[0].mxu0
    %v587 = vadd.f32 0.0, %v586
    %v588 = vpop.f32.mrb[0].mxu0
    %589 = vmatprep.mubr.f32.mxu0 0.0
    %590 = vmatmul.mubr.f32.gmra.mrb[0].mxu0 %v508
    %v591 = vpop.f32.mrb[0].mxu0
    %v592 = vadd.f32 0.0, %v591
    %v593 = vpop.f32.mrb[0].mxu0
    %594 = vdwg.mxu0
    %v595 = vmul.f32 %v577, %v44
    %v596 = vmul.f32 %v582, %v45
    %v597 = vmul.f32 %v587, %v46
    %v598 = vmul.f32 %v592, %v47
    %v600 = vsel %vm83, %v137, 0
    %602 = vmatprep.subr.mxu0 0.0
    %603 = vmatpush1.msra.mxu0 %v595
    %604 = vmatprep.subr.mxu0 0.0
    %605 = vmatpush1.msra.mxu0 %v596
    %606 = vmatprep.subr.mxu0 0.0
    %607 = vmatpush1.msra.mxu0 %v597
    %608 = vmatprep.subr.mxu0 0.0
    %609 = vmatpush1.msra.mxu0 %v598
    %610 = vmatprep.subr.mxu0 0.0
    %611 = vmatpush1.msra.mxu0 0.0
    %612 = vmatprep.subr.mxu0 0.0
    %613 = vmatpush1.msra.mxu0 0.0
    %614 = vmatprep.subr.mxu0 0.0
    %615 = vmatpush1.msra.mxu0 0.0
    %616 = vmatprep.subr.mxu0 0.0
    %617 = vmatpush1.msra.mxu0 0.0
    %618 = vmatprep.subr.mxu0 0.0
    %619 = vmatpush1.msra.mxu0 0.0
    %620 = vmatprep.subr.mxu0 0.0
    %621 = vmatpush1.msra.mxu0 0.0
    %622 = vmatprep.subr.mxu0 0.0
    %623 = vmatpush1.msra.mxu0 0.0
    %624 = vmatprep.subr.mxu0 0.0
    %625 = vmatpush1.msra.mxu0 0.0
    %626 = vmatprep.subr.mxu0 0.0
    %627 = vmatpush1.msra.mxu0 0.0
    %628 = vmatprep.subr.mxu0 0.0
    %629 = vmatpush1.msra.mxu0 0.0
    %630 = vmatprep.subr.mxu0 0.0
    %631 = vmatpush1.msra.mxu0 0.0
    %632 = vmatprep.subr.mxu0 0.0
    %633 = vmatpush1.msra.mxu0 0.0
    %634 = vmatprep.subr.mxu0 0.0
    %635 = vmatpush1.msra.mxu0 0.0
    %636 = vmatprep.subr.mxu0 0.0
    %637 = vmatpush1.msra.mxu0 0.0
    %638 = vmatprep.subr.mxu0 0.0
    %639 = vmatpush1.msra.mxu0 0.0
    %640 = vmatprep.subr.mxu0 0.0
    %641 = vmatpush1.msra.mxu0 0.0
    %642 = vmatprep.subr.mxu0 0.0
    %643 = vmatpush1.msra.mxu0 0.0
    %644 = vmatprep.subr.mxu0 0.0
    %645 = vmatpush1.msra.mxu0 0.0
    %646 = vmatprep.subr.mxu0 0.0
    %647 = vmatpush1.msra.mxu0 0.0
    %648 = vmatprep.subr.mxu0 0.0
    %649 = vmatpush1.msra.mxu0 0.0
    %650 = vmatprep.subr.mxu0 0.0
    %651 = vmatpush1.msra.mxu0 0.0
    %652 = vmatprep.subr.mxu0 0.0
    %653 = vmatpush1.msra.mxu0 0.0
    %654 = vmatprep.subr.mxu0 0.0
    %655 = vmatpush1.msra.mxu0 0.0
    %656 = vmatprep.subr.mxu0 0.0
    %657 = vmatpush1.msra.mxu0 0.0
    %658 = vmatprep.subr.mxu0 0.0
    %659 = vmatpush1.msra.mxu0 0.0
    %660 = vmatprep.subr.mxu0 0.0
    %661 = vmatpush1.msra.mxu0 0.0
    %662 = vmatprep.subr.mxu0 0.0
    %663 = vmatpush1.msra.mxu0 0.0
    %664 = vmatprep.subr.mxu0 0.0
    %665 = vmatpush1.msra.mxu0 0.0
    %666 = vmatprep.mubr.f32.mxu0 0.0
    %667 = vmatmul.mubr.f32.gmra.mrb[0].mxu0 %v600
    %v668 = vpop.f32.mrb[0].mxu0
    %v669 = vadd.f32 0.0, %v668
    %v670 = vpop.f32.mrb[0].mxu0
    %671 = vdwg.mxu0
    %673 = vrot.lane.b32.xlu0 %v457, 96
    %v674 = vpop.permute.xlu0 %673
    %v676 = vmul.f32 %v137, %v674
    %v678 = vsel %vm83, %v676, 0
    %680 = vmatprep.subr.mxu0 0.0
    %681 = vmatpush1.msra.mxu0 %v44
    %682 = vmatprep.subr.mxu0 0.0
    %683 = vmatpush1.msra.mxu0 %v45
    %684 = vmatprep.subr.mxu0 0.0
    %685 = vmatpush1.msra.mxu0 %v46
    %686 = vmatprep.subr.mxu0 0.0
    %687 = vmatpush1.msra.mxu0 %v47
    %688 = vmatprep.subr.mxu0 0.0
    %689 = vmatpush1.msra.mxu0 0.0
    %690 = vmatprep.subr.mxu0 0.0
    %691 = vmatpush1.msra.mxu0 0.0
    %692 = vmatprep.subr.mxu0 0.0
    %693 = vmatpush1.msra.mxu0 0.0
    %694 = vmatprep.subr.mxu0 0.0
    %695 = vmatpush1.msra.mxu0 0.0
    %696 = vmatprep.subr.mxu0 0.0
    %697 = vmatpush1.msra.mxu0 0.0
    %698 = vmatprep.subr.mxu0 0.0
    %699 = vmatpush1.msra.mxu0 0.0
    %700 = vmatprep.subr.mxu0 0.0
    %701 = vmatpush1.msra.mxu0 0.0
    %702 = vmatprep.subr.mxu0 0.0
    %703 = vmatpush1.msra.mxu0 0.0
    %704 = vmatprep.subr.mxu0 0.0
    %705 = vmatpush1.msra.mxu0 0.0
    %706 = vmatprep.subr.mxu0 0.0
    %707 = vmatpush1.msra.mxu0 0.0
    %708 = vmatprep.subr.mxu0 0.0
    %709 = vmatpush1.msra.mxu0 0.0
    %710 = vmatprep.subr.mxu0 0.0
    %711 = vmatpush1.msra.mxu0 0.0
    %712 = vmatprep.subr.mxu0 0.0
    %713 = vmatpush1.msra.mxu0 0.0
    %714 = vmatprep.subr.mxu0 0.0
    %715 = vmatpush1.msra.mxu0 0.0
    %716 = vmatprep.subr.mxu0 0.0
    %717 = vmatpush1.msra.mxu0 0.0
    %718 = vmatprep.subr.mxu0 0.0
    %719 = vmatpush1.msra.mxu0 0.0
    %720 = vmatprep.subr.mxu0 0.0
    %721 = vmatpush1.msra.mxu0 0.0
    %722 = vmatprep.subr.mxu0 0.0
    %723 = vmatpush1.msra.mxu0 0.0
    %724 = vmatprep.subr.mxu0 0.0
    %725 = vmatpush1.msra.mxu0 0.0
    %726 = vmatprep.subr.mxu0 0.0
    %727 = vmatpush1.msra.mxu0 0.0
    %728 = vmatprep.subr.mxu0 0.0
    %729 = vmatpush1.msra.mxu0 0.0
    %730 = vmatprep.subr.mxu0 0.0
    %731 = vmatpush1.msra.mxu0 0.0
    %732 = vmatprep.subr.mxu0 0.0
    %733 = vmatpush1.msra.mxu0 0.0
    %734 = vmatprep.subr.mxu0 0.0
    %735 = vmatpush1.msra.mxu0 0.0
    %736 = vmatprep.subr.mxu0 0.0
    %737 = vmatpush1.msra.mxu0 0.0
    %738 = vmatprep.subr.mxu0 0.0
    %739 = vmatpush1.msra.mxu0 0.0
    %740 = vmatprep.subr.mxu0 0.0
    %741 = vmatpush1.msra.mxu0 0.0
    %742 = vmatprep.subr.mxu0 0.0
    %743 = vmatpush1.msra.mxu0 0.0
    %744 = vmatprep.mubr.f32.mxu0 0.0
    %745 = vmatmul.mubr.f32.gmra.mrb[0].mxu0 %v678
    %v746 = vpop.f32.mrb[0].mxu0
    %v747 = vadd.f32 0.0, %v746
    %v748 = vpop.f32.mrb[0].mxu0
    %749 = vdwg.mxu0
    %v750 = vrcp.pop %v448
    %v751 = vrcp.pop %v747
    %v752 = vmul.f32 %v370, %v750
    %v753 = vmul.f32 %v669, %v751
    %v754 = vpack.c.bf16 %v753, %v752
    %v755 = vlaneseq
    %v756 = vshrl.u32 %v755, 7
    %v757 = vsub.s32 0, %v756
    %v758 = vrot.slane %v61, %v757
    %v763 = vunpack.c.l.b16 %v48
    %v764 = vunpack.c.l.b16 %v49
    %v765 = vunpack.c.l.b16 %v50
    %v766 = vunpack.c.l.b16 %v51
    %v767 = vpack.c.b16 %v764, %v763
    %v768 = vpack.c.b16 %v766, %v765
    %v772 = vsel %vm83, %v754, 0
    %774 = vmatprep.subr.bf16.mxu0 0
    %775 = vmatpush1.bf16.msra.mxu0 %v767
    %776 = vmatprep.subr.bf16.mxu0 0
    %777 = vmatpush1.bf16.msra.mxu0 %v768
    %778 = vmatprep.subr.bf16.mxu0 0
    %779 = vmatpush1.bf16.msra.mxu0 0
    %780 = vmatprep.subr.bf16.mxu0 0
    %781 = vmatpush1.bf16.msra.mxu0 0
    %782 = vmatprep.subr.bf16.mxu0 0
    %783 = vmatpush1.bf16.msra.mxu0 0
    %784 = vmatprep.subr.bf16.mxu0 0
    %785 = vmatpush1.bf16.msra.mxu0 0
    %786 = vmatprep.subr.bf16.mxu0 0
    %787 = vmatpush1.bf16.msra.mxu0 0
    %788 = vmatprep.subr.bf16.mxu0 0
    %789 = vmatpush1.bf16.msra.mxu0 0
    %790 = vmatprep.subr.bf16.mxu0 0
    %791 = vmatpush1.bf16.msra.mxu0 0
    %792 = vmatprep.subr.bf16.mxu0 0
    %793 = vmatpush1.bf16.msra.mxu0 0
    %794 = vmatprep.subr.bf16.mxu0 0
    %795 = vmatpush1.bf16.msra.mxu0 0
    %796 = vmatprep.subr.bf16.mxu0 0
    %797 = vmatpush1.bf16.msra.mxu0 0
    %798 = vmatprep.subr.bf16.mxu0 0
    %799 = vmatpush1.bf16.msra.mxu0 0
    %800 = vmatprep.subr.bf16.mxu0 0
    %801 = vmatpush1.bf16.msra.mxu0 0
    %802 = vmatprep.subr.bf16.mxu0 0
    %803 = vmatpush1.bf16.msra.mxu0 0
    %804 = vmatprep.subr.bf16.mxu0 0
    %805 = vmatpush1.bf16.msra.mxu0 0
    %806 = vmatprep.mubr.bf16.mxu0 0
    %807 = vmatmul.mubr.bf16.gmra.mrb[0].mxu0 %v772
    %v808 = vpop.f32.mrb[0].mxu0
    %v809 = vadd.f32 %v758, %v808
    %v810 = vpop.f32.mrb[0].mxu0
    %v811 = vpop.f32.mrb[0].mxu0
    %v812 = vadd.f32 %v758, %v811
    %v813 = vpop.f32.mrb[0].mxu0
    %814 = vdwg.mxu0
    %v815 = vadd.f32 %v24, %v809
    %v816 = vadd.f32 %v25, %v812
    %v817 = vsel %vm83, %v815, 0.0
    %818 = vadd.xlane.f32.xlu0 %v817
    %v819 = vpop.xlane.xlu0 %818
    %v820 = vsel %vm83, %v816, 0.0
    %821 = vadd.xlane.f32.xlu0 %v820
    %v822 = vpop.xlane.xlu0 %821
    %v823 = vrcp.pop 32.0
    %v824 = vmul.f32 %v819, %v823
    %v825 = vmul.f32 %v822, %v823
    %v826 = vsub.f32 %v815, %v824
    %v827 = vsub.f32 %v816, %v825
    %v828 = vmul.f32 %v826, %v826
    %v829 = vmul.f32 %v827, %v827
    %v830 = vsel %vm83, %v828, 0.0
    %831 = vadd.xlane.f32.xlu0 %v830
    %v832 = vpop.xlane.xlu0 %831
    %v833 = vsel %vm83, %v829, 0.0
    %834 = vadd.xlane.f32.xlu0 %v833
    %v835 = vpop.xlane.xlu0 %834
    %v836 = vmul.f32 %v832, %v823
    %v837 = vmul.f32 %v835, %v823
    %v838 = vadd.f32 %v836, 1e-12
    %v839 = vadd.f32 %v837, 1e-12
    %v840 = vrsqrt.pop %v838
    %v841 = vrsqrt.pop %v839
    %v842 = vmul.f32 %v826, %v840
    %v843 = vmul.f32 %v827, %v841
    %v844 = vlaneseq
    %v845 = vshrl.u32 %v844, 7
    %v846 = vsub.s32 1, %v845
    %v847 = vrot.slane %v61, %v846
    %v848 = vmul.f32 %v842, %v847
    %v849 = vmul.f32 %v843, %v847
    %v850 = vlaneseq
    %v851 = vshrl.u32 %v850, 7
    %v852 = vsub.s32 2, %v851
    %v853 = vrot.slane %v61, %v852
    %v854 = vadd.f32 %v848, %v853
    %v855 = vadd.f32 %v849, %v853
    %v856 = vpack.c.bf16 %v855, %v854
    %v857 = vlaneseq
    %v858 = vshrl.u32 %v857, 7
    %v859 = vsub.s32 0, %v858
    %v860 = vrot.slane %v39, %v859
    %v865 = vunpack.c.l.b16 %v34
    %v866 = vunpack.c.l.b16 %v35
    %v867 = vunpack.c.l.b16 %v36
    %v868 = vunpack.c.l.b16 %v37
    %v869 = vpack.c.b16 %v866, %v865
    %v870 = vpack.c.b16 %v868, %v867
    %v874 = vsel %vm83, %v856, 0
    %876 = vmatprep.subr.bf16.mxu0 0
    %877 = vmatpush1.bf16.msra.mxu0 %v869
    %878 = vmatprep.subr.bf16.mxu0 0
    %879 = vmatpush1.bf16.msra.mxu0 %v870
    %880 = vmatprep.subr.bf16.mxu0 0
    %881 = vmatpush1.bf16.msra.mxu0 0
    %882 = vmatprep.subr.bf16.mxu0 0
    %883 = vmatpush1.bf16.msra.mxu0 0
    %884 = vmatprep.subr.bf16.mxu0 0
    %885 = vmatpush1.bf16.msra.mxu0 0
    %886 = vmatprep.subr.bf16.mxu0 0
    %887 = vmatpush1.bf16.msra.mxu0 0
    %888 = vmatprep.subr.bf16.mxu0 0
    %889 = vmatpush1.bf16.msra.mxu0 0
    %890 = vmatprep.subr.bf16.mxu0 0
    %891 = vmatpush1.bf16.msra.mxu0 0
    %892 = vmatprep.subr.bf16.mxu0 0
    %893 = vmatpush1.bf16.msra.mxu0 0
    %894 = vmatprep.subr.bf16.mxu0 0
    %895 = vmatpush1.bf16.msra.mxu0 0
    %896 = vmatprep.subr.bf16.mxu0 0
    %897 = vmatpush1.bf16.msra.mxu0 0
    %898 = vmatprep.subr.bf16.mxu0 0
    %899 = vmatpush1.bf16.msra.mxu0 0
    %900 = vmatprep.subr.bf16.mxu0 0
    %901 = vmatpush1.bf16.msra.mxu0 0
    %902 = vmatprep.subr.bf16.mxu0 0
    %903 = vmatpush1.bf16.msra.mxu0 0
    %904 = vmatprep.subr.bf16.mxu0 0
    %905 = vmatpush1.bf16.msra.mxu0 0
    %906 = vmatprep.subr.bf16.mxu0 0
    %907 = vmatpush1.bf16.msra.mxu0 0
    %908 = vmatprep.mubr.bf16.mxu0 0
    %909 = vmatmul.mubr.bf16.gmra.mrb[0].mxu0 %v874
    %v910 = vpop.f32.mrb[0].mxu0
    %v911 = vadd.f32 %v860, %v910
    %v912 = vpop.f32.mrb[0].mxu0
    %v913 = vpop.f32.mrb[0].mxu0
    %v914 = vadd.f32 %v860, %v913
    %v915 = vpop.f32.mrb[0].mxu0
    %916 = vdwg.mxu0
    %v917 = vmul.f32 %v911, %v911
    %v918 = vmul.f32 %v914, %v914
    %v919 = vmul.f32 %v911, %v917
    %v920 = vmul.f32 %v914, %v918
    %v921 = vmul.f32 %v919, 0.044715
    %v922 = vmul.f32 %v920, 0.044715
    %v923 = vadd.f32 %v911, %v921
    %v924 = vadd.f32 %v914, %v922
    %v925 = vmul.f32 %v923, 0.7978846
    %v926 = vmul.f32 %v924, 0.7978846
    %v927 = vtanh.pop %v925
    %v928 = vtanh.pop %v926
    %v929 = vadd.f32 %v927, 1.0
    %v930 = vadd.f32 %v928, 1.0
    %v931 = vmul.f32 %v929, 0.5
    %v932 = vmul.f32 %v930, 0.5
    %v933 = vmul.f32 %v911, %v931
    %v934 = vmul.f32 %v914, %v932
    %v935 = vpack.c.bf16 %v934, %v933
    %v936 = vlaneseq
    %v937 = vshrl.u32 %v936, 7
    %v938 = vsub.s32 3, %v937
    %v939 = vrot.slane %v61, %v938
    %v948 = vunpack.c.l.b16 %v52
    %v949 = vunpack.c.l.b16 %v53
    %v950 = vunpack.c.l.b16 %v54
    %v951 = vunpack.c.l.b16 %v55
    %v952 = vunpack.c.l.b16 %v56
    %v953 = vunpack.c.l.b16 %v57
    %v954 = vunpack.c.l.b16 %v58
    %v955 = vunpack.c.l.b16 %v59
    %v956 = vpack.c.b16 %v949, %v948
    %v957 = vpack.c.b16 %v951, %v950
    %v958 = vpack.c.b16 %v953, %v952
    %v959 = vpack.c.b16 %v955, %v954
    %vm964 = vcmask 523264
    %v966 = vsel %vm964, %v935, 0
    %968 = vmatprep.subr.bf16.mxu0 0
    %969 = vmatpush1.bf16.msra.mxu0 %v956
    %970 = vmatprep.subr.bf16.mxu0 0
    %971 = vmatpush1.bf16.msra.mxu0 %v957
    %972 = vmatprep.subr.bf16.mxu0 0
    %973 = vmatpush1.bf16.msra.mxu0 %v958
    %974 = vmatprep.subr.bf16.mxu0 0
    %975 = vmatpush1.bf16.msra.mxu0 %v959
    %976 = vmatprep.subr.bf16.mxu0 0
    %977 = vmatpush1.bf16.msra.mxu0 0
    %978 = vmatprep.subr.bf16.mxu0 0
    %979 = vmatpush1.bf16.msra.mxu0 0
    %980 = vmatprep.subr.bf16.mxu0 0
    %981 = vmatpush1.bf16.msra.mxu0 0
    %982 = vmatprep.subr.bf16.mxu0 0
    %983 = vmatpush1.bf16.msra.mxu0 0
    %984 = vmatprep.subr.bf16.mxu0 0
    %985 = vmatpush1.bf16.msra.mxu0 0
    %986 = vmatprep.subr.bf16.mxu0 0
    %987 = vmatpush1.bf16.msra.mxu0 0
    %988 = vmatprep.subr.bf16.mxu0 0
    %989 = vmatpush1.bf16.msra.mxu0 0
    %990 = vmatprep.subr.bf16.mxu0 0
    %991 = vmatpush1.bf16.msra.mxu0 0
    %992 = vmatprep.subr.bf16.mxu0 0
    %993 = vmatpush1.bf16.msra.mxu0 0
    %994 = vmatprep.subr.bf16.mxu0 0
    %995 = vmatpush1.bf16.msra.mxu0 0
    %996 = vmatprep.subr.bf16.mxu0 0
    %997 = vmatpush1.bf16.msra.mxu0 0
    %998 = vmatprep.subr.bf16.mxu0 0
    %999 = vmatpush1.bf16.msra.mxu0 0
    %1000 = vmatprep.mubr.bf16.mxu0 0
    %1001 = vmatmul.mubr.bf16.gmra.mrb[0].mxu0 %v966
    %v1002 = vpop.f32.mrb[0].mxu0
    %v1003 = vadd.f32 %v939, %v1002
    %v1004 = vpop.f32.mrb[0].mxu0
    %v1005 = vpop.f32.mrb[0].mxu0
    %v1006 = vadd.f32 %v939, %v1005
    %v1007 = vpop.f32.mrb[0].mxu0
    %1008 = vdwg.mxu0
    %v1009 = vadd.f32 %v1003, %v854
    %v1010 = vadd.f32 %v1006, %v855
    %v1011 = vsel %vm83, %v1009, 0.0
    %1012 = vadd.xlane.f32.xlu0 %v1011
    %v1013 = vpop.xlane.xlu0 %1012
    %v1014 = vsel %vm83, %v1010, 0.0
    %1015 = vadd.xlane.f32.xlu0 %v1014
    %v1016 = vpop.xlane.xlu0 %1015
    %v1017 = vmul.f32 %v1013, %v823
    %v1018 = vmul.f32 %v1016, %v823
    %v1019 = vsub.f32 %v1009, %v1017
    %v1020 = vsub.f32 %v1010, %v1018
    %v1021 = vmul.f32 %v1019, %v1019
    %v1022 = vmul.f32 %v1020, %v1020
    %v1023 = vsel %vm83, %v1021, 0.0
    %1024 = vadd.xlane.f32.xlu0 %v1023
    %v1025 = vpop.xlane.xlu0 %1024
    %v1026 = vsel %vm83, %v1022, 0.0
    %1027 = vadd.xlane.f32.xlu0 %v1026
    %v1028 = vpop.xlane.xlu0 %1027
    %v1029 = vmul.f32 %v1025, %v823
    %v1030 = vmul.f32 %v1028, %v823
    %v1031 = vadd.f32 %v1029, 1e-12
    %v1032 = vadd.f32 %v1030, 1e-12
    %v1033 = vrsqrt.pop %v1031
    %v1034 = vrsqrt.pop %v1032
    %v1035 = vmul.f32 %v1019, %v1033
    %v1036 = vmul.f32 %v1020, %v1034
    %v1037 = vlaneseq
    %v1038 = vshrl.u32 %v1037, 7
    %v1039 = vsub.s32 4, %v1038
    %v1040 = vrot.slane %v61, %v1039
    %v1041 = vmul.f32 %v1035, %v1040
    %v1042 = vmul.f32 %v1036, %v1040
    %v1043 = vlaneseq
    %v1044 = vshrl.u32 %v1043, 7
    %v1045 = vsub.s32 5, %v1044
    %v1046 = vrot.slane %v61, %v1045
    %v1047 = vadd.f32 %v1041, %v1046
    %v1048 = vadd.f32 %v1042, %v1046
    %1049 = vst.msk [vmem:[#allocation2] sm:$0xff] %vm83, %v1047
    %1050 = vst.msk [vmem:[#allocation2 + $0x8] sm:$0xff] %vm83, %v1048
    // Predicated region
    $region22: #{oskar_layer.1} parent=1 // pred_check
      _
    $region23: #{oskar_layer.1} parent=1 // pred_check_branch
      %1052 = sbr.rel (0) target = $region25
    $region24: #{oskar_layer.1} parent=1 // pred_region
      %s1054 = ssub.s32 256, 256
      %1055 = vsyncadd [#allocation3], %s1054
      %s1056 = sshll.u32 [#allocation2], 4
      %s1057 = int_to_ptr.vmem [resolvable:$true] %s1056
      %1062 = dma.vmem_to_hbm [thread:$0]  %s1057, 256, %s5, [#allocation3], 128, 128, 8
    $region25: #{oskar_layer.1} parent=1 // pred_fallthru
      _
    // Predicated region
    $region26: #{oskar_layer.1} parent=1 // pred_check
      _
    $region27: #{oskar_layer.1} parent=1 // pred_check_branch
      %1064 = sbr.rel (0) target = $region29
    $region28: #{oskar_layer.1} parent=1 // pred_region
      %1065 = dma.done [#allocation3], 256
    $region29: #{oskar_layer.1} parent=1 // pred_fallthru
      _
    %1066 = vsyncpa [#allocation3], 1

</llo_original>
